<compile_context>
chip_gen: v7x
topology: tpu7x:2x2x1
jax: 0.10.0
libtpu: 0.0.40
codegen_flags: <defaults>
</compile_context>

<pallas_src>
import numpy as np
import jax
import jax.numpy as jnp
from jax.experimental import pallas as pl
from jax.experimental.pallas import tpu as pltpu


def _face_embed_kernel(x_ref, wk_ref, bconv_ref, wpp_ref, bproj_ref, out_ref):
    # x_ref:     (BT*H, 3*Wp*C_in)   bf16, kh-folded padded rows (one per output row)
    # wk_ref:    (3*Wp*C_in, W*C_mid) bf16, kw-banded + kh-stacked conv weights
    # bconv_ref: (1, W*C_mid)         f32
    # wpp_ref:   (W*C_mid, Dp)        f32, width-pool (1/(H*W) folded in) fused with projection
    # bproj_ref: (1, Dp)              f32
    # out_ref:   (BT, Dp)             f32, L2-normalized embeddings (cols >= D are zero)
    bt = out_ref.shape[0]
    rows, wc = x_ref.shape[0], wk_ref.shape[1]
    h_rows = rows // bt                                    # == H

    # 3x3 "same" conv as a single deep MXU matmul (K folds kh, kw, C_in).
    h = jnp.dot(x_ref[...], wk_ref[...], preferred_element_type=jnp.float32)
    h = jnp.maximum(h + bconv_ref[...], 0.0)               # bias + ReLU

    # Global average pool over height: per-sample sublane reduce (linear cost,
    # no quadratic selector matmul).  1/(H*W) is folded into wpp.
    pooled = jnp.sum(h.reshape(bt, h_rows, wc), axis=1)    # (BT, W*C_mid)

    # Pool over width + linear projection, fused into one MXU matmul.
    feat = jnp.dot(pooled, wpp_ref[...],
                   preferred_element_type=jnp.float32) + bproj_ref[...]

    # F.normalize(p=2, dim=1): x / max(||x||, 1e-12) == x * rsqrt(max(ss, 1e-24)).
    # Padded feature columns are exactly zero, so they do not perturb ss.
    ss = jnp.sum(feat * feat, axis=1, keepdims=True)
    out_ref[...] = feat * jax.lax.rsqrt(jnp.maximum(ss, 1e-24))


def _round_up(a, m):
    return -(-a // m) * m


def make_face_embedding_extractor(w_conv, b_conv, w_proj, b_proj,
                                  *, image_shape, block_b=128):
    """Build a jitted forward(x_nchw) -> (B, D) L2-normalized embeddings.

    w_conv: (9*C_in, C_mid), b_conv: (C_mid,) or (1, C_mid),
    w_proj: (C_mid, D),      b_proj: (D,) or (1, D).
    image_shape = (C_in, H, W).  Constant prep runs once here (numpy) and the
    resulting device arrays are closed over — nothing is rebuilt per call.
    """
    assert block_b % 8 == 0
    C_in, H, W = image_shape
    KH = KW = 3
    Hp, Wp = H + 2, W + 2
    C_mid = int(w_conv.shape[1])
    D = int(w_proj.shape[1])
    assert int(w_conv.shape[0]) == KH * KW * C_in
    WC = W * C_mid
    Kdim = KH * Wp * C_in
    Dp = _round_up(max(D, 128), 128)                       # lane-dense output

    # ---- constant prep (once): kw-banded, kh-stacked conv weights ----
    wt = np.asarray(w_conv, np.float32).reshape(KH, KW, C_in, C_mid)
    shift = np.zeros((KW, Wp, W), np.float32)               # shift[kw, v+kw, v] = 1
    for kw in range(KW):
        for v in range(W):
            shift[kw, v + kw, v] = 1.0
    wband = np.einsum('kuv,hkcm->hucvm', shift, wt).reshape(Kdim, WC)
    wk = jnp.asarray(wband, jnp.bfloat16)

    bconv = jnp.asarray(
        np.tile(np.asarray(b_conv, np.float32).reshape(1, C_mid), (1, W)))

    wpp_np = np.zeros((WC, Dp), np.float32)
    wpp_np[:, :D] = np.tile(np.asarray(w_proj, np.float32), (W, 1)) / float(H * W)
    wpp = jnp.asarray(wpp_np)

    bproj_np = np.zeros((1, Dp), np.float32)
    bproj_np[0, :D] = np.asarray(b_proj, np.float32).reshape(-1)
    bproj = jnp.asarray(bproj_np)

    def forward(x_nchw):
        B = x_nchw.shape[0]
        # Batch tile: sublane-aligned; >= 2 grid steps whenever B allows so the
        # "parallel" batch axis can shard across both v7x TensorCores.
        BT = min(block_b, max(8, _round_up(-(-B // 2), 8)))
        B_pad = _round_up(B, BT)
        grid = (B_pad // BT,)

        # Layout glue: NCHW -> NHWC, spatial zero-pad, fold kh into the K dim,
        # cast the streamed tensor to bf16.
        x = jnp.transpose(x_nchw, (0, 2, 3, 1)).astype(jnp.float32)
        xp = jnp.pad(x, ((0, B_pad - B), (1, 1), (1, 1), (0, 0)))
        xr = xp.reshape(B_pad, Hp, Wp * C_in)
        x3 = jnp.concatenate([xr[:, kh:kh + H, :] for kh in range(KH)], axis=-1)
        x3 = x3.reshape(B_pad * H, Kdim).astype(jnp.bfloat16)

        # VMEM budget: double-buffered x/out tiles + constants + conv activation.
        x_tile = BT * H * Kdim * 2
        out_tile = BT * Dp * 4
        const_b = Kdim * WC * 2 + WC * Dp * 4 + (WC + Dp) * 4
        h_b = BT * H * WC * 4
        vmem_limit = int(min(max(2 * (x_tile + out_tile) + const_b + h_b
                                 + (4 << 20), 8 << 20), 48 << 20))

        out = pl.pallas_call(
            _face_embed_kernel,
            out_shape=jax.ShapeDtypeStruct((B_pad, Dp), jnp.float32),
            grid_spec=pltpu.PrefetchScalarGridSpec(
                num_scalar_prefetch=0,
                grid=grid,
                in_specs=[
                    pl.BlockSpec((BT * H, Kdim), lambda b: (b, 0)),
                    pl.BlockSpec((Kdim, WC), lambda b: (0, 0)),
                    pl.BlockSpec((1, WC), lambda b: (0, 0)),
                    pl.BlockSpec((WC, Dp), lambda b: (0, 0)),
                    pl.BlockSpec((1, Dp), lambda b: (0, 0)),
                ],
                out_specs=pl.BlockSpec((BT, Dp), lambda b: (b, 0)),
            ),
            compiler_params=pltpu.CompilerParams(
                dimension_semantics=("parallel",),
                vmem_limit_bytes=vmem_limit),
        )(x3, wk, bconv, wpp, bproj)
        return out[:B, :D]

    return jax.jit(forward)


def _reference(x_nchw, w_conv, b_conv, w_proj, b_proj):
    """Pure-JAX f32 reference (im2col formulation) for correctness checking."""
    B, C_in, H, W = x_nchw.shape
    x = jnp.transpose(x_nchw, (0, 2, 3, 1))
    xp = jnp.pad(x, ((0, 0), (1, 1), (1, 1), (0, 0)))
    patch_list = []
    for kh in range(3):
        for kw in range(3):
            patch_list.append(xp[:, kh:kh + H, kw:kw + W, :])
    patches = jnp.concatenate(patch_list, axis=-1).reshape(B, H * W, -1)
    h = jnp.maximum(patches @ w_conv + b_conv.reshape(1, 1, -1), 0.0)
    pooled = jnp.mean(h, axis=1)
    feat = pooled @ w_proj + b_proj.reshape(1, -1)
    norm = jnp.maximum(jnp.linalg.norm(feat, axis=1, keepdims=True), 1e-12)
    return feat / norm


if __name__ == "__main__":
    # Small shapes consistent with the module's forward: image-like NCHW input.
    B, C_in, H, W = 2, 4, 16, 16
    C_mid, D = 8, 32
    K2C = 3 * 3 * C_in

    key = jax.random.PRNGKey(0)
    kx, kw1, kb1, kw2, kb2, kx2 = jax.random.split(key, 6)

    x = jax.random.normal(kx, (B, C_in, H, W), dtype=jnp.float32)
    # Deterministic synthetic backbone parameters (no checkpoint load).
    w_conv = jax.random.normal(kw1, (K2C, C_mid), dtype=jnp.float32) * 0.1
    b_conv = jax.random.normal(kb1, (1, C_mid), dtype=jnp.float32) * 0.1
    w_proj = jax.random.normal(kw2, (C_mid, D), dtype=jnp.float32) * 0.1
    b_proj = jax.random.normal(kb2, (1, D), dtype=jnp.float32) * 0.1

    extractor = make_face_embedding_extractor(
        w_conv, b_conv, w_proj, b_proj, image_shape=(C_in, H, W))

    out = jax.block_until_ready(extractor(x))
    ref = _reference(x, w_conv, b_conv, w_proj, b_proj)
    assert out.shape == (B, D)
    # bf16 input/weight cast -> loosened tolerance vs. the f32 reference.
    assert jnp.allclose(out, ref, atol=1e-2, rtol=1e-2)
    # Embeddings are unit-norm (F.normalize semantics; norm computed in f32).
    assert jnp.allclose(jnp.linalg.norm(out, axis=1), 1.0, atol=1e-4)

    # Exercise the multi-tile grid path (2 grid steps + padded batch tail).
    B2 = 20
    x_big = jax.random.normal(kx2, (B2, C_in, H, W), dtype=jnp.float32)
    out2 = jax.block_until_ready(extractor(x_big))
    ref2 = _reference(x_big, w_conv, b_conv, w_proj, b_proj)
    assert out2.shape == (B2, D)
    assert jnp.allclose(out2, ref2, atol=1e-2, rtol=1e-2)
    assert jnp.allclose(jnp.linalg.norm(out2, axis=1), 1.0, atol=1e-4)

    print("KERNEL_OK")
</pallas_src>

<mosaic_0001>
module attributes {stable_mosaic.version = 11 : i64} {
  func.func @_face_embed_kernel(%arg0: i32, %arg1: memref<128x216xbf16, #tpu.memory_space<vmem>>, %arg2: memref<216x128xbf16, #tpu.memory_space<vmem>>, %arg3: memref<1x128xf32, #tpu.memory_space<vmem>>, %arg4: memref<128x128xf32, #tpu.memory_space<vmem>>, %arg5: memref<1x128xf32, #tpu.memory_space<vmem>>, %arg6: memref<8x128xf32, #tpu.memory_space<vmem>>) attributes {dimension_semantics = [#tpu.dimension_semantics<parallel>], iteration_bounds = array<i64: 1>, scalar_prefetch = 0 : i64, scratch_operands = 0 : i64, tpu.core_type = #tpu.core_type<tc>, window_params = [{transform_indices = @transform_0, window_bounds = array<i64: 128, 216>}, {pipeline_mode = #tpu.pipeline_mode<synchronous>, transform_indices = @transform_1, window_bounds = array<i64: 216, 128>}, {pipeline_mode = #tpu.pipeline_mode<synchronous>, transform_indices = @transform_2, window_bounds = array<i64: 1, 128>}, {pipeline_mode = #tpu.pipeline_mode<synchronous>, transform_indices = @transform_3, window_bounds = array<i64: 128, 128>}, {pipeline_mode = #tpu.pipeline_mode<synchronous>, transform_indices = @transform_4, window_bounds = array<i64: 1, 128>}, {transform_indices = @transform_5, window_bounds = array<i64: 8, 128>}]} {
    %c0 = arith.constant 0 : index
    %c0_0 = arith.constant 0 : index
    %0 = vector.load %arg1[%c0, %c0_0] : memref<128x216xbf16, #tpu.memory_space<vmem>>, vector<128x216xbf16>
    %c0_1 = arith.constant 0 : index
    %c0_2 = arith.constant 0 : index
    %1 = vector.load %arg2[%c0_1, %c0_2] : memref<216x128xbf16, #tpu.memory_space<vmem>>, vector<216x128xbf16>
    %cst = arith.constant dense<0.000000e+00> : vector<128x128xf32>
    %2 = tpu.matmul %0, %1, %cst {dimension_numbers = #tpu.dot_dimension_numbers<[1], [0], [0], [1], [0, 0, 1, 1], [], []>} : vector<128x216xbf16>, vector<216x128xbf16>, vector<128x128xf32> -> vector<128x128xf32>
    %c0_3 = arith.constant 0 : index
    %c0_4 = arith.constant 0 : index
    %3 = vector.load %arg3[%c0_3, %c0_4] : memref<1x128xf32, #tpu.memory_space<vmem>>, vector<1x128xf32>
    %4 = vector.broadcast %3 : vector<1x128xf32> to vector<128x128xf32>
    %5 = arith.addf %2, %4 : vector<128x128xf32>
    %cst_5 = arith.constant 0.000000e+00 : f32
    %6 = vector.broadcast %cst_5 : f32 to vector<128x128xf32>
    %7 = arith.maximumf %5, %6 : vector<128x128xf32>
    %8 = vector.shape_cast %7 : vector<128x128xf32> to vector<8x16x128xf32>
    %cst_6 = arith.constant dense<0.000000e+00> : vector<8x128xf32>
    %9 = vector.multi_reduction <add>, %8, %cst_6 [1] : vector<8x16x128xf32> to vector<8x128xf32>
    %c0_7 = arith.constant 0 : index
    %c0_8 = arith.constant 0 : index
    %10 = vector.load %arg4[%c0_7, %c0_8] : memref<128x128xf32, #tpu.memory_space<vmem>>, vector<128x128xf32>
    %cst_9 = arith.constant dense<0.000000e+00> : vector<8x128xf32>
    %11 = tpu.matmul %9, %10, %cst_9 {dimension_numbers = #tpu.dot_dimension_numbers<[1], [0], [0], [1], [0, 0, 1, 1], [], []>} : vector<8x128xf32>, vector<128x128xf32>, vector<8x128xf32> -> vector<8x128xf32>
    %c0_10 = arith.constant 0 : index
    %c0_11 = arith.constant 0 : index
    %12 = vector.load %arg5[%c0_10, %c0_11] : memref<1x128xf32, #tpu.memory_space<vmem>>, vector<1x128xf32>
    %13 = vector.broadcast %12 : vector<1x128xf32> to vector<8x128xf32>
    %14 = arith.addf %11, %13 : vector<8x128xf32>
    %15 = arith.mulf %14, %14 : vector<8x128xf32>
    %cst_12 = arith.constant dense<0.000000e+00> : vector<8xf32>
    %16 = vector.multi_reduction <add>, %15, %cst_12 [1] : vector<8x128xf32> to vector<8xf32>
    %17 = vector.shape_cast %16 : vector<8xf32> to vector<8x1xf32>
    %cst_13 = arith.constant 1.000000e-24 : f32
    %18 = vector.broadcast %cst_13 : f32 to vector<8x1xf32>
    %19 = arith.maximumf %17, %18 : vector<8x1xf32>
    %20 = math.rsqrt %19 : vector<8x1xf32>
    %21 = vector.broadcast %20 : vector<8x1xf32> to vector<8x128xf32>
    %22 = arith.mulf %14, %21 : vector<8x128xf32>
    %c0_14 = arith.constant 0 : index
    %c0_15 = arith.constant 0 : index
    %23 = vector.load %arg6[%c0_14, %c0_15] : memref<8x128xf32, #tpu.memory_space<vmem>>, vector<8x128xf32>
    tpu.vector_store %arg6[%c0_14, %c0_15], %22 {strides = array<i32>} : memref<8x128xf32, #tpu.memory_space<vmem>>, vector<8x128xf32>,
    return
  }
  func.func @transform_0(%arg0: i32) -> (i32, i32) {
    %c0_i32 = arith.constant 0 : i32
    %c0_i32_0 = arith.constant 0 : i32
    return %arg0, %c0_i32 : i32, i32
  }
  func.func @transform_1(%arg0: i32) -> (i32, i32) {
    %c0_i32 = arith.constant 0 : i32
    %c0_i32_0 = arith.constant 0 : i32
    %c0_i32_1 = arith.constant 0 : i32
    return %c0_i32, %c0_i32_0 : i32, i32
  }
  func.func @transform_2(%arg0: i32) -> (i32, i32) {
    %c0_i32 = arith.constant 0 : i32
    %c0_i32_0 = arith.constant 0 : i32
    %c0_i32_1 = arith.constant 0 : i32
    return %c0_i32, %c0_i32_0 : i32, i32
  }
  func.func @transform_3(%arg0: i32) -> (i32, i32) {
    %c0_i32 = arith.constant 0 : i32
    %c0_i32_0 = arith.constant 0 : i32
    %c0_i32_1 = arith.constant 0 : i32
    return %c0_i32, %c0_i32_0 : i32, i32
  }
  func.func @transform_4(%arg0: i32) -> (i32, i32) {
    %c0_i32 = arith.constant 0 : i32
    %c0_i32_0 = arith.constant 0 : i32
    %c0_i32_1 = arith.constant 0 : i32
    return %c0_i32, %c0_i32_0 : i32, i32
  }
  func.func @transform_5(%arg0: i32) -> (i32, i32) {
    %c0_i32 = arith.constant 0 : i32
    %c0_i32_0 = arith.constant 0 : i32
    return %arg0, %c0_i32 : i32, i32
  }
}

</mosaic_0001>

<llo_original>
// kernel: forward.1
$region0: #{forward.1}
  #allocation0 [shape = 'u32[]', space=smem, size = 0x4, offset = 0x4, fixed_abs, tag = 'smem constant byte address 0x4 - core index']
  #allocation1 [shape = 'u32[144,128]{1,0:T(1,128)}', space=vmem, size = 0x12000, scoped, tag = 'internal scratch']
  %s0 = inlined_call_operand.vmem [shape: bf16[128,216], index: 0, kind: input, shape index: {}]
  %s1 = inlined_call_operand.vmem [shape: bf16[216,128], index: 1, kind: input, shape index: {}]
  %s2 = inlined_call_operand.vmem [shape: f32[1,128], index: 2, kind: input, shape index: {}]
  %s3 = inlined_call_operand.vmem [shape: f32[128,128], index: 3, kind: input, shape index: {}]
  %s4 = inlined_call_operand.vmem [shape: f32[1,128], index: 4, kind: input, shape index: {}]
  %s5 = inlined_call_operand.vmem [shape: f32[8,128], index: 5, kind: output, shape index: {}]
  %s6 = sld [smem:[#allocation0]]
  $region30: #{forward.1} parent=0
    _
  %s8 = ssub.s32 1, %s6
  %s9 = scalar_select 0, %s8, %s6
  // Predicated region
  $region2: #{forward.1} parent=0 // pred_check
    _
  $region3: #{forward.1} parent=0 // pred_check_branch
    %11 = sbr.rel (0) target = $region5
  $region4: #{forward.1} parent=0 // pred_region
    _
  $region5: #{forward.1} parent=0 // pred_fallthru
    _
  // Predicated region
  $region6: #{forward.1} parent=0 // pred_check
    _
  $region7: #{forward.1} parent=0 // pred_check_branch
    %13 = sbr.rel (0) target = $region9
  $region8: #{forward.1} parent=0 // pred_region
    _
  $region9: #{forward.1} parent=0 // pred_fallthru
    _
  // Predicated region
  $region10: #{forward.1} parent=0 // pred_check
    _
  $region11: #{forward.1} parent=0 // pred_check_branch
    %15 = sbr.rel (0) target = $region13
  $region12: #{forward.1} parent=0 // pred_region
    _
  $region13: #{forward.1} parent=0 // pred_fallthru
    _
  // Predicated region
  $region14: #{forward.1} parent=0 // pred_check
    _
  $region15: #{forward.1} parent=0 // pred_check_branch
    %17 = sbr.rel (0) target = $region17
  $region16: #{forward.1} parent=0 // pred_region
    _
  $region17: #{forward.1} parent=0 // pred_fallthru
    _
  // Predicated region
  $region18: #{forward.1} parent=0 // pred_check
    _
  $region19: #{forward.1} parent=0 // pred_check_branch
    %19 = sbr.rel (0) target = $region21
  $region20: #{forward.1} parent=0 // pred_region
    _
  $region21: #{forward.1} parent=0 // pred_fallthru
    _
  %v21 = vld [vmem:[%s0] sm:$0xff]
  %v22 = vld [vmem:[%s0 + $0x8] sm:$0xff]
  %v23 = vld [vmem:[%s0 + $0x10] sm:$0xff]
  %v24 = vld [vmem:[%s0 + $0x18] sm:$0xff]
  %v25 = vld [vmem:[%s0 + $0x20] sm:$0xff]
  %v26 = vld [vmem:[%s0 + $0x28] sm:$0xff]
  %v27 = vld [vmem:[%s0 + $0x30] sm:$0xff]
  %v28 = vld [vmem:[%s0 + $0x38] sm:$0xff]
  %v29 = vld [vmem:[%s0 + $0x40] sm:$0xff]
  %v30 = vld [vmem:[%s0 + $0x48] sm:$0xff]
  %v31 = vld [vmem:[%s0 + $0x50] sm:$0xff]
  %v32 = vld [vmem:[%s0 + $0x58] sm:$0xff]
  %v33 = vld [vmem:[%s0 + $0x60] sm:$0xff]
  %v34 = vld [vmem:[%s0 + $0x68] sm:$0xff]
  %v35 = vld [vmem:[%s0 + $0x70] sm:$0xff]
  %v36 = vld [vmem:[%s0 + $0x78] sm:$0xff]
  %v37 = vld [vmem:[%s1] sm:$0xf]
  %v38 = vld [vmem:[%s1 + $0x4] sm:$0xf]
  %v39 = vld [vmem:[%s1 + $0x8] sm:$0xf]
  %v40 = vld [vmem:[%s1 + $0xc] sm:$0xf]
  %v41 = vld [vmem:[%s1 + $0x10] sm:$0xf]
  %v42 = vld [vmem:[%s1 + $0x14] sm:$0xf]
  %v43 = vld [vmem:[%s1 + $0x18] sm:$0xf]
  %v44 = vld [vmem:[%s1 + $0x1c] sm:$0xf]
  %v45 = vld [vmem:[%s1 + $0x20] sm:$0xf]
  %v46 = vld [vmem:[%s1 + $0x24] sm:$0xf]
  %v47 = vld [vmem:[%s1 + $0x28] sm:$0xf]
  %v48 = vld [vmem:[%s1 + $0x2c] sm:$0xf]
  %v49 = vld [vmem:[%s1 + $0x30] sm:$0xf]
  %v50 = vld [vmem:[%s1 + $0x34] sm:$0xf]
  %v51 = vld [vmem:[%s1 + $0x38] sm:$0xf]
  %v52 = vld [vmem:[%s1 + $0x3c] sm:$0xf]
  %v53 = vld [vmem:[%s1 + $0x40] sm:$0xf]
  %v54 = vld [vmem:[%s1 + $0x44] sm:$0xf]
  %v55 = vld [vmem:[%s1 + $0x48] sm:$0xf]
  %v56 = vld [vmem:[%s1 + $0x4c] sm:$0xf]
  %v57 = vld [vmem:[%s1 + $0x50] sm:$0xf]
  %v58 = vld [vmem:[%s1 + $0x54] sm:$0xf]
  %v59 = vld [vmem:[%s1 + $0x58] sm:$0xf]
  %v60 = vld [vmem:[%s1 + $0x5c] sm:$0xf]
  %v61 = vld [vmem:[%s1 + $0x60] sm:$0xf]
  %v62 = vld [vmem:[%s1 + $0x64] sm:$0xf]
  %v63 = vld [vmem:[%s1 + $0x68] sm:$0xf]
  %v64 = vld [vmem:[%s2] sm:$0x1]
  %v66 = vlaneseq
  %v67 = vshrl.u32 %v66, 7
  %v68 = vsub.s32 0, %v67
  %v69 = vrot.slane %v64, %v68
  %v87 = vunpack.c.l.b16 %v21
  %v88 = vunpack.c.h.b16 %v21
  %v89 = vunpack.c.l.b16 %v22
  %v90 = vunpack.c.h.b16 %v22
  %v91 = vunpack.c.l.b16 %v23
  %v92 = vunpack.c.h.b16 %v23
  %v93 = vunpack.c.l.b16 %v24
  %v94 = vunpack.c.h.b16 %v24
  %v95 = vunpack.c.l.b16 %v25
  %v96 = vunpack.c.h.b16 %v25
  %v97 = vunpack.c.l.b16 %v26
  %v98 = vunpack.c.h.b16 %v26
  %v99 = vunpack.c.l.b16 %v27
  %v100 = vunpack.c.h.b16 %v27
  %v101 = vunpack.c.l.b16 %v28
  %v102 = vunpack.c.h.b16 %v28
  %v103 = vunpack.c.l.b16 %v29
  %v104 = vunpack.c.h.b16 %v29
  %v105 = vunpack.c.l.b16 %v30
  %v106 = vunpack.c.h.b16 %v30
  %v107 = vunpack.c.l.b16 %v31
  %v108 = vunpack.c.h.b16 %v31
  %v109 = vunpack.c.l.b16 %v32
  %v110 = vunpack.c.h.b16 %v32
  %v111 = vunpack.c.l.b16 %v33
  %v112 = vunpack.c.h.b16 %v33
  %v113 = vunpack.c.l.b16 %v34
  %v114 = vunpack.c.h.b16 %v34
  %v115 = vunpack.c.l.b16 %v35
  %v116 = vunpack.c.h.b16 %v35
  %v117 = vunpack.c.l.b16 %v36
  %v118 = vunpack.c.h.b16 %v36
  %v119 = vpack.c.b16 %v89, %v87
  %v120 = vpack.c.b16 %v90, %v88
  %v121 = vpack.c.b16 %v93, %v91
  %v122 = vpack.c.b16 %v94, %v92
  %v123 = vpack.c.b16 %v97, %v95
  %v124 = vpack.c.b16 %v98, %v96
  %v125 = vpack.c.b16 %v101, %v99
  %v126 = vpack.c.b16 %v102, %v100
  %v127 = vpack.c.b16 %v105, %v103
  %v128 = vpack.c.b16 %v106, %v104
  %v129 = vpack.c.b16 %v109, %v107
  %v130 = vpack.c.b16 %v110, %v108
  %v131 = vpack.c.b16 %v113, %v111
  %v132 = vpack.c.b16 %v114, %v112
  %v133 = vpack.c.b16 %v117, %v115
  %v134 = vpack.c.b16 %v118, %v116
  %v170 = vunpack.c.l.b16 %v37
  %v171 = vunpack.c.l.b16 %v38
  %v172 = vunpack.c.l.b16 %v39
  %v173 = vunpack.c.l.b16 %v40
  %v174 = vunpack.c.l.b16 %v41
  %v175 = vunpack.c.l.b16 %v42
  %v176 = vunpack.c.l.b16 %v43
  %v177 = vunpack.c.l.b16 %v44
  %v178 = vunpack.c.l.b16 %v45
  %v179 = vunpack.c.l.b16 %v46
  %v180 = vunpack.c.l.b16 %v47
  %v181 = vunpack.c.l.b16 %v48
  %v182 = vunpack.c.l.b16 %v49
  %v183 = vunpack.c.l.b16 %v50
  %v184 = vunpack.c.l.b16 %v51
  %v185 = vunpack.c.l.b16 %v52
  %v186 = vunpack.c.l.b16 %v53
  %v187 = vunpack.c.l.b16 %v54
  %v188 = vunpack.c.l.b16 %v55
  %v189 = vunpack.c.l.b16 %v56
  %v190 = vunpack.c.l.b16 %v57
  %v191 = vunpack.c.l.b16 %v58
  %v192 = vunpack.c.l.b16 %v59
  %v193 = vunpack.c.l.b16 %v60
  %v194 = vunpack.c.l.b16 %v61
  %v195 = vunpack.c.l.b16 %v62
  %v196 = vunpack.c.l.b16 %v63
  %v197 = vpack.c.b16 %v171, %v170
  %v198 = vpack.c.b16 %v173, %v172
  %v199 = vpack.c.b16 %v175, %v174
  %v200 = vpack.c.b16 %v177, %v176
  %v201 = vpack.c.b16 %v179, %v178
  %v202 = vpack.c.b16 %v181, %v180
  %v203 = vpack.c.b16 %v183, %v182
  %v204 = vpack.c.b16 %v185, %v184
  %v205 = vpack.c.b16 %v187, %v186
  %v206 = vpack.c.b16 %v189, %v188
  %v207 = vpack.c.b16 %v191, %v190
  %v208 = vpack.c.b16 %v193, %v192
  %v209 = vpack.c.b16 %v195, %v194
  %v210 = vpack.c.b16 %v196, %v196
  %vm224 = vcmask 719872
  %v226 = vsel %vm224, %v120, 0
  %v229 = vsel %vm224, %v122, 0
  %v232 = vsel %vm224, %v124, 0
  %v235 = vsel %vm224, %v126, 0
  %v238 = vsel %vm224, %v128, 0
  %v241 = vsel %vm224, %v130, 0
  %v244 = vsel %vm224, %v132, 0
  %v247 = vsel %vm224, %v134, 0
  %vm249 = vcmask 1043456
  %v251 = vsel %vm249, %v210, 0
  %253 = vmatprep.subr.bf16.mxu0 0
  %254 = vmatpush1.bf16.msra.mxu0 %v197
  %255 = vmatprep.subr.bf16.mxu0 0
  %256 = vmatpush1.bf16.msra.mxu0 %v198
  %257 = vmatprep.subr.bf16.mxu0 0
  %258 = vmatpush1.bf16.msra.mxu0 %v199
  %259 = vmatprep.subr.bf16.mxu0 0
  %260 = vmatpush1.bf16.msra.mxu0 %v200
  %261 = vmatprep.subr.bf16.mxu0 0
  %262 = vmatpush1.bf16.msra.mxu0 %v201
  %263 = vmatprep.subr.bf16.mxu0 0
  %264 = vmatpush1.bf16.msra.mxu0 %v202
  %265 = vmatprep.subr.bf16.mxu0 0
  %266 = vmatpush1.bf16.msra.mxu0 %v203
  %267 = vmatprep.subr.bf16.mxu0 0
  %268 = vmatpush1.bf16.msra.mxu0 %v204
  %269 = vmatprep.subr.bf16.mxu0 0
  %270 = vmatpush1.bf16.msra.mxu0 %v205
  %271 = vmatprep.subr.bf16.mxu0 0
  %272 = vmatpush1.bf16.msra.mxu0 %v206
  %273 = vmatprep.subr.bf16.mxu0 0
  %274 = vmatpush1.bf16.msra.mxu0 %v207
  %275 = vmatprep.subr.bf16.mxu0 0
  %276 = vmatpush1.bf16.msra.mxu0 %v208
  %277 = vmatprep.subr.bf16.mxu0 0
  %278 = vmatpush1.bf16.msra.mxu0 %v209
  %279 = vmatprep.subr.bf16.mxu0 0
  %280 = vmatpush1.bf16.msra.mxu0 %v251
  %281 = vmatprep.subr.bf16.mxu0 0
  %282 = vmatpush1.bf16.msra.mxu0 0
  %283 = vmatprep.subr.bf16.mxu0 0
  %284 = vmatpush1.bf16.msra.mxu0 0
  %285 = vmatprep.mubr.bf16.mxu0 %v226
  %286 = vmatmul.mubr.bf16.gmra.mrb[0].mxu0 %v119
  %v287 = vpop.f32.mrb[0].mxu0
  %v288 = vadd.f32 %v69, %v287
  %v289 = vpop.f32.mrb[0].mxu0
  %v290 = vpop.f32.mrb[0].mxu0
  %v291 = vadd.f32 %v69, %v290
  %v292 = vpop.f32.mrb[0].mxu0
  %293 = vmatprep.mubr.bf16.mxu0 %v229
  %294 = vmatmul.mubr.bf16.gmra.mrb[0].mxu0 %v121
  %v295 = vpop.f32.mrb[0].mxu0
  %v296 = vadd.f32 %v69, %v295
  %v297 = vpop.f32.mrb[0].mxu0
  %v298 = vpop.f32.mrb[0].mxu0
  %v299 = vadd.f32 %v69, %v298
  %v300 = vpop.f32.mrb[0].mxu0
  %301 = vmatprep.mubr.bf16.mxu0 %v232
  %302 = vmatmul.mubr.bf16.gmra.mrb[0].mxu0 %v123
  %v303 = vpop.f32.mrb[0].mxu0
  %v304 = vadd.f32 %v69, %v303
  %v305 = vpop.f32.mrb[0].mxu0
  %v306 = vpop.f32.mrb[0].mxu0
  %v307 = vadd.f32 %v69, %v306
  %v308 = vpop.f32.mrb[0].mxu0
  %309 = vmatprep.mubr.bf16.mxu0 %v235
  %310 = vmatmul.mubr.bf16.gmra.mrb[0].mxu0 %v125
  %v311 = vpop.f32.mrb[0].mxu0
  %v312 = vadd.f32 %v69, %v311
  %v313 = vpop.f32.mrb[0].mxu0
  %v314 = vpop.f32.mrb[0].mxu0
  %v315 = vadd.f32 %v69, %v314
  %v316 = vpop.f32.mrb[0].mxu0
  %317 = vmatprep.mubr.bf16.mxu0 %v238
  %318 = vmatmul.mubr.bf16.gmra.mrb[0].mxu0 %v127
  %v319 = vpop.f32.mrb[0].mxu0
  %v320 = vadd.f32 %v69, %v319
  %v321 = vpop.f32.mrb[0].mxu0
  %v322 = vpop.f32.mrb[0].mxu0
  %v323 = vadd.f32 %v69, %v322
  %v324 = vpop.f32.mrb[0].mxu0
  %325 = vmatprep.mubr.bf16.mxu0 %v241
  %326 = vmatmul.mubr.bf16.gmra.mrb[0].mxu0 %v129
  %v327 = vpop.f32.mrb[0].mxu0
  %v328 = vadd.f32 %v69, %v327
  %v329 = vpop.f32.mrb[0].mxu0
  %v330 = vpop.f32.mrb[0].mxu0
  %v331 = vadd.f32 %v69, %v330
  %v332 = vpop.f32.mrb[0].mxu0
  %333 = vmatprep.mubr.bf16.mxu0 %v244
  %334 = vmatmul.mubr.bf16.gmra.mrb[0].mxu0 %v131
  %v335 = vpop.f32.mrb[0].mxu0
  %v336 = vadd.f32 %v69, %v335
  %v337 = vpop.f32.mrb[0].mxu0
  %v338 = vpop.f32.mrb[0].mxu0
  %v339 = vadd.f32 %v69, %v338
  %v340 = vpop.f32.mrb[0].mxu0
  %341 = vmatprep.mubr.bf16.mxu0 %v247
  %342 = vmatmul.mubr.bf16.gmra.mrb[0].mxu0 %v133
  %v343 = vpop.f32.mrb[0].mxu0
  %v344 = vadd.f32 %v69, %v343
  %v345 = vpop.f32.mrb[0].mxu0
  %v346 = vpop.f32.mrb[0].mxu0
  %v347 = vadd.f32 %v69, %v346
  %v348 = vpop.f32.mrb[0].mxu0
  %349 = vdwg.mxu0
  %v350 = vmax.f32 %v288, 0.0
  %v351 = vmax.f32 %v291, 0.0
  %v352 = vmax.f32 %v296, 0.0
  %v353 = vmax.f32 %v299, 0.0
  %v354 = vmax.f32 %v304, 0.0
  %v355 = vmax.f32 %v307, 0.0
  %v356 = vmax.f32 %v312, 0.0
  %v357 = vmax.f32 %v315, 0.0
  %v358 = vmax.f32 %v320, 0.0
  %v359 = vmax.f32 %v323, 0.0
  %v360 = vmax.f32 %v328, 0.0
  %v361 = vmax.f32 %v331, 0.0
  %v362 = vmax.f32 %v336, 0.0
  %v363 = vmax.f32 %v339, 0.0
  %v364 = vmax.f32 %v344, 0.0
  %v365 = vmax.f32 %v347, 0.0
  %v366 = vadd.f32 %v350, %v351
  %v367 = vrot.slane %v366, 4
  %v368 = vadd.f32 %v366, %v367
  %v369 = vrot.slane %v368, 2
  %v370 = vadd.f32 %v368, %v369
  %v371 = vrot.slane %v370, 1
  %v372 = vadd.f32 %v370, %v371
  %v373 = vadd.f32 %v352, %v353
  %v374 = vrot.slane %v373, 4
  %v375 = vadd.f32 %v373, %v374
  %v376 = vrot.slane %v375, 2
  %v377 = vadd.f32 %v375, %v376
  %v378 = vrot.slane %v377, 1
  %v379 = vadd.f32 %v377, %v378
  %v380 = vadd.f32 %v354, %v355
  %v381 = vrot.slane %v380, 4
  %v382 = vadd.f32 %v380, %v381
  %v383 = vrot.slane %v382, 2
  %v384 = vadd.f32 %v382, %v383
  %v385 = vrot.slane %v384, 1
  %v386 = vadd.f32 %v384, %v385
  %v387 = vadd.f32 %v356, %v357
  %v388 = vrot.slane %v387, 4
  %v389 = vadd.f32 %v387, %v388
  %v390 = vrot.slane %v389, 2
  %v391 = vadd.f32 %v389, %v390
  %v392 = vrot.slane %v391, 1
  %v393 = vadd.f32 %v391, %v392
  %v394 = vadd.f32 %v358, %v359
  %v395 = vrot.slane %v394, 4
  %v396 = vadd.f32 %v394, %v395
  %v397 = vrot.slane %v396, 2
  %v398 = vadd.f32 %v396, %v397
  %v399 = vrot.slane %v398, 1
  %v400 = vadd.f32 %v398, %v399
  %v401 = vadd.f32 %v360, %v361
  %v402 = vrot.slane %v401, 4
  %v403 = vadd.f32 %v401, %v402
  %v404 = vrot.slane %v403, 2
  %v405 = vadd.f32 %v403, %v404
  %v406 = vrot.slane %v405, 1
  %v407 = vadd.f32 %v405, %v406
  %v408 = vadd.f32 %v362, %v363
  %v409 = vrot.slane %v408, 4
  %v410 = vadd.f32 %v408, %v409
  %v411 = vrot.slane %v410, 2
  %v412 = vadd.f32 %v410, %v411
  %v413 = vrot.slane %v412, 1
  %v414 = vadd.f32 %v412, %v413
  %v415 = vadd.f32 %v364, %v365
  %v416 = vrot.slane %v415, 4
  %v417 = vadd.f32 %v415, %v416
  %v418 = vrot.slane %v417, 2
  %v419 = vadd.f32 %v417, %v418
  %v420 = vrot.slane %v419, 1
  %v421 = vadd.f32 %v419, %v420
  %v422 = vld [vmem:[%s3] sm:$0xff]
  %v423 = vld [vmem:[%s3 + $0x8] sm:$0xff]
  %v424 = vld [vmem:[%s3 + $0x10] sm:$0xff]
  %v425 = vld [vmem:[%s3 + $0x18] sm:$0xff]
  %v426 = vld [vmem:[%s3 + $0x20] sm:$0xff]
  %v427 = vld [vmem:[%s3 + $0x28] sm:$0xff]
  %v428 = vld [vmem:[%s3 + $0x30] sm:$0xff]
  %v429 = vld [vmem:[%s3 + $0x38] sm:$0xff]
  %v430 = vld [vmem:[%s3 + $0x40] sm:$0xff]
  %v431 = vld [vmem:[%s3 + $0x48] sm:$0xff]
  %v432 = vld [vmem:[%s3 + $0x50] sm:$0xff]
  %v433 = vld [vmem:[%s3 + $0x58] sm:$0xff]
  %v434 = vld [vmem:[%s3 + $0x60] sm:$0xff]
  %v435 = vld [vmem:[%s3 + $0x68] sm:$0xff]
  %v436 = vld [vmem:[%s3 + $0x70] sm:$0xff]
  %v437 = vld [vmem:[%s3 + $0x78] sm:$0xff]
  %v438 = vld [vmem:[%s4] sm:$0x1]
  %v440 = vlaneseq
  %v441 = vshrl.u32 %v440, 7
  %v442 = vsub.s32 0, %v441
  %v443 = vrot.slane %v438, %v442
  %vm453 = vcmask 1041409
  %v454 = vsel %vm453, %v379, %v372
  %vm455 = vcmask 1042434
  %v456 = vsel %vm455, %v386, %v454
  %vm457 = vcmask 1043459
  %v458 = vsel %vm457, %v393, %v456
  %vm459 = vcmask 1044484
  %v460 = vsel %vm459, %v400, %v458
  %vm461 = vcmask 1045509
  %v462 = vsel %vm461, %v407, %v460
  %vm463 = vcmask 1046534
  %v464 = vsel %vm463, %v414, %v462
  %vm465 = vcmask 1047559
  %v466 = vsel %vm465, %v421, %v464
  %468 = vmatprep.subr.mxu0 0.0
  %469 = vmatpush1.msra.mxu0 %v422
  %470 = vmatprep.subr.mxu0 0.0
  %471 = vmatpush1.msra.mxu0 %v423
  %472 = vmatprep.subr.mxu0 0.0
  %473 = vmatpush1.msra.mxu0 %v424
  %474 = vmatprep.subr.mxu0 0.0
  %475 = vmatpush1.msra.mxu0 %v425
  %476 = vmatprep.subr.mxu0 0.0
  %477 = vmatpush1.msra.mxu0 %v426
  %478 = vmatprep.subr.mxu0 0.0
  %479 = vmatpush1.msra.mxu0 %v427
  %480 = vmatprep.subr.mxu0 0.0
  %481 = vmatpush1.msra.mxu0 %v428
  %482 = vmatprep.subr.mxu0 0.0
  %483 = vmatpush1.msra.mxu0 %v429
  %484 = vmatprep.subr.mxu0 0.0
  %485 = vmatpush1.msra.mxu0 %v430
  %486 = vmatprep.subr.mxu0 0.0
  %487 = vmatpush1.msra.mxu0 %v431
  %488 = vmatprep.subr.mxu0 0.0
  %489 = vmatpush1.msra.mxu0 %v432
  %490 = vmatprep.subr.mxu0 0.0
  %491 = vmatpush1.msra.mxu0 %v433
  %492 = vmatprep.subr.mxu0 0.0
  %493 = vmatpush1.msra.mxu0 %v434
  %494 = vmatprep.subr.mxu0 0.0
  %495 = vmatpush1.msra.mxu0 %v435
  %496 = vmatprep.subr.mxu0 0.0
  %497 = vmatpush1.msra.mxu0 %v436
  %498 = vmatprep.subr.mxu0 0.0
  %499 = vmatpush1.msra.mxu0 %v437
  %500 = vmatprep.subr.mxu0 0.0
  %501 = vmatpush1.msra.mxu0 0.0
  %502 = vmatprep.subr.mxu0 0.0
  %503 = vmatpush1.msra.mxu0 0.0
  %504 = vmatprep.subr.mxu0 0.0
  %505 = vmatpush1.msra.mxu0 0.0
  %506 = vmatprep.subr.mxu0 0.0
  %507 = vmatpush1.msra.mxu0 0.0
  %508 = vmatprep.subr.mxu0 0.0
  %509 = vmatpush1.msra.mxu0 0.0
  %510 = vmatprep.subr.mxu0 0.0
  %511 = vmatpush1.msra.mxu0 0.0
  %512 = vmatprep.subr.mxu0 0.0
  %513 = vmatpush1.msra.mxu0 0.0
  %514 = vmatprep.subr.mxu0 0.0
  %515 = vmatpush1.msra.mxu0 0.0
  %516 = vmatprep.subr.mxu0 0.0
  %517 = vmatpush1.msra.mxu0 0.0
  %518 = vmatprep.subr.mxu0 0.0
  %519 = vmatpush1.msra.mxu0 0.0
  %520 = vmatprep.subr.mxu0 0.0
  %521 = vmatpush1.msra.mxu0 0.0
  %522 = vmatprep.subr.mxu0 0.0
  %523 = vmatpush1.msra.mxu0 0.0
  %524 = vmatprep.subr.mxu0 0.0
  %525 = vmatpush1.msra.mxu0 0.0
  %526 = vmatprep.subr.mxu0 0.0
  %527 = vmatpush1.msra.mxu0 0.0
  %528 = vmatprep.subr.mxu0 0.0
  %529 = vmatpush1.msra.mxu0 0.0
  %530 = vmatprep.subr.mxu0 0.0
  %531 = vmatpush1.msra.mxu0 0.0
  %532 = vmatprep.mubr.f32.mxu0 0.0
  %533 = vmatmul.mubr.f32.gmra.mrb[0].mxu0 %v466
  %v534 = vpop.f32.mrb[0].mxu0
  %v535 = vadd.f32 %v443, %v534
  %v536 = vpop.f32.mrb[0].mxu0
  %537 = vdwg.mxu0
  %v538 = vmul.f32 %v535, %v535
  %539 = vadd.xlane.f32.xlu0 %v538
  %v540 = vpop.xlane.xlu0 %539
  %v541 = vmax.f32 %v540, 1e-24
  %v542 = vrsqrt.pop %v541
  %v543 = vmul.f32 %v535, %v542
  %544 = vst [vmem:[%s5] sm:$0xff] %v543
  // Predicated region
  $region22: #{forward.1} parent=0 // pred_check
    _
  $region23: #{forward.1} parent=0 // pred_check_branch
    %546 = sbr.rel (0) target = $region25
  $region24: #{forward.1} parent=0 // pred_region
    _
  $region25: #{forward.1} parent=0 // pred_fallthru
    _
  // Predicated region
  $region26: #{forward.1} parent=0 // pred_check
    _
  $region27: #{forward.1} parent=0 // pred_check_branch
    %548 = sbr.rel (0) target = $region29
  $region28: #{forward.1} parent=0 // pred_region
    _
  $region29: #{forward.1} parent=0 // pred_fallthru
    _

</llo_original>
